<compile_context>
chip_gen: v5e
topology: v5e:2x2
jax: 0.10.0
libtpu: 0.0.40
codegen_flags: <defaults>
</compile_context>

<pallas_src>
import numpy as np

import jax
import jax.numpy as jnp
from jax.experimental import pallas as pl
from jax.experimental.pallas import tpu as pltpu


def _round_up(a, b):
    return -(-a // b) * b


def zinc_atom_encoder_kernel(x_ref, s_ref, g_ref, colmod_ref, tbig_ref, out_ref):
    xp = x_ref[...]                                        # (tp, pack*(k+1)) f32

    # Pass-through features scattered to their lane groups in the packed output.
    feat = jnp.dot(xp, s_ref[...],
                   preferred_element_type=jnp.float32,
                   precision=jax.lax.Precision.HIGHEST)    # (tp, pack*emb_dim)

    # Each row's atom id, replicated across its in_dim-wide lane group.
    ids = jnp.dot(xp, g_ref[...],
                  preferred_element_type=jnp.float32,
                  precision=jax.lax.Precision.HIGHEST)     # (tp, pack*in_dim)

    # One-hot over each lane group (column index mod in_dim == id).
    onehot = (ids.astype(jnp.int32) == colmod_ref[...]).astype(jnp.float32)

    # Embedding gather as one-hot @ lane-shifted table copies (exact: single 1/row-group).
    emb = jnp.dot(onehot, tbig_ref[...],
                  preferred_element_type=jnp.float32,
                  precision=jax.lax.Precision.HIGHEST)     # (tp, pack*emb_dim)

    out_ref[...] = feat + emb                              # single dense 128-lane store


def zinc_atom_encoder(x, emb_table, k, *, tile_n=4096):
    N, cols = x.shape
    in_dim, emb_minus_k = emb_table.shape
    emb_dim = emb_minus_k + k
    assert cols == k + 1, "x must have k feature columns + 1 atom-id column"

    # Rows folded into one lane-dense 128-wide output row (1 if emb_dim doesn't divide 128).
    pack = 128 // emb_dim if (emb_dim <= 128 and 128 % emb_dim == 0) else 1
    kp1 = k + 1
    row_align = 8 * pack                       # keep >= 8 sublanes per packed block

    # Large tiles amortize per-grid-step overhead; keep several grid steps for
    # megacore ("parallel") sharding when N is large.
    tile_n = _round_up(max(1, min(tile_n, max(N // 8, 1))), row_align)
    n_pad = _round_up(N, tile_n)
    tile_p = tile_n // pack

    xf = x.astype(jnp.float32)
    if n_pad != N:
        xf = jnp.concatenate(
            [xf, jnp.zeros((n_pad - N, cols), jnp.float32)], axis=0)
    x_packed = xf.reshape(n_pad // pack, pack * kp1)       # free row-major repack

    # Tiny constant scatter / gather matrices (host-side).
    S = np.zeros((pack * kp1, pack * emb_dim), np.float32)
    G = np.zeros((pack * kp1, pack * in_dim), np.float32)
    for j in range(pack):
        for c in range(k):
            S[j * kp1 + c, j * emb_dim + c] = 1.0
        G[j * kp1 + k, j * in_dim:(j + 1) * in_dim] = 1.0
    col_mod = np.tile(np.arange(in_dim, dtype=np.int32), pack)[None, :]  # (1, pack*in_dim)

    # Embedding table replicated into its per-row lane group (offset k inside each group).
    t_big = jnp.zeros((pack * in_dim, pack * emb_dim), jnp.float32)
    for j in range(pack):
        t_big = t_big.at[j * in_dim:(j + 1) * in_dim,
                         j * emb_dim + k:(j + 1) * emb_dim].set(
                             emb_table.astype(jnp.float32))

    out_packed = pl.pallas_call(
        zinc_atom_encoder_kernel,
        out_shape=jax.ShapeDtypeStruct((n_pad // pack, pack * emb_dim), jnp.float32),
        grid_spec=pl.GridSpec(
            grid=(n_pad // tile_n,),
            in_specs=[
                pl.BlockSpec((tile_p, pack * kp1), lambda i: (i, 0)),          # x rows
                pl.BlockSpec((pack * kp1, pack * emb_dim), lambda i: (0, 0)),  # S
                pl.BlockSpec((pack * kp1, pack * in_dim), lambda i: (0, 0)),   # G
                pl.BlockSpec((1, pack * in_dim), lambda i: (0, 0)),            # col % in_dim
                pl.BlockSpec((pack * in_dim, pack * emb_dim), lambda i: (0, 0)),  # T_big
            ],
            out_specs=pl.BlockSpec((tile_p, pack * emb_dim), lambda i: (i, 0)),
        ),
        compiler_params=pltpu.CompilerParams(
            dimension_semantics=("parallel",)),
    )(x_packed, jnp.asarray(S), jnp.asarray(G), jnp.asarray(col_mod), t_big)

    out = out_packed.reshape(n_pad, emb_dim)
    return out[:N] if n_pad != N else out


if __name__ == "__main__":
    # Small shapes consistent with the module: ZINC-style atom encoder.
    N = 16          # number of atoms/nodes
    k = 3           # pass-through feature columns
    emb_dim = 32    # total output width
    in_dim = 28     # vocabulary size (ZINC atom types)

    key = jax.random.PRNGKey(0)
    k_feat, k_idx, k_tab = jax.random.split(key, 3)

    feats = jax.random.normal(k_feat, (N, k), dtype=jnp.float32)
    atom_ids = jax.random.randint(k_idx, (N,), 0, in_dim)
    x = jnp.concatenate([feats, atom_ids.astype(jnp.float32)[:, None]], axis=1)  # (N, k+1)

    # Deterministic "Embedding" weight init (nn.Embedding default is N(0,1)).
    emb_table = jax.random.normal(k_tab, (in_dim, emb_dim - k), dtype=jnp.float32)

    out = zinc_atom_encoder(x, emb_table, k)
    out = jax.block_until_ready(out)

    # Pure-JAX reference of the PyTorch forward.
    ref = jnp.concatenate([x[:, :k], emb_table[x[:, k].astype(jnp.int32)]], axis=1)
    assert out.shape == (N, emb_dim)
    assert jnp.allclose(out, ref, atol=1e-6, rtol=1e-6), "mismatch vs reference"

    print("KERNEL_OK")
</pallas_src>

<mosaic_0001>
module attributes {stable_mosaic.version = 11 : i64} {
  func.func @zinc_atom_encoder_kernel(%arg0: i32, %arg1: memref<8x16xf32, #tpu.memory_space<vmem>>, %arg2: memref<16x128xf32, #tpu.memory_space<vmem>>, %arg3: memref<16x112xf32, #tpu.memory_space<vmem>>, %arg4: memref<1x112xi32, #tpu.memory_space<vmem>>, %arg5: memref<112x128xf32, #tpu.memory_space<vmem>>, %arg6: memref<8x128xf32, #tpu.memory_space<vmem>>) attributes {dimension_semantics = [#tpu.dimension_semantics<parallel>], iteration_bounds = array<i64: 1>, scalar_prefetch = 0 : i64, scratch_operands = 0 : i64, tpu.core_type = #tpu.core_type<tc>, window_params = [{transform_indices = @transform_0, window_bounds = array<i64: 8, 16>}, {pipeline_mode = #tpu.pipeline_mode<synchronous>, transform_indices = @transform_1, window_bounds = array<i64: 16, 128>}, {pipeline_mode = #tpu.pipeline_mode<synchronous>, transform_indices = @transform_2, window_bounds = array<i64: 16, 112>}, {pipeline_mode = #tpu.pipeline_mode<synchronous>, transform_indices = @transform_3, window_bounds = array<i64: 1, 112>}, {pipeline_mode = #tpu.pipeline_mode<synchronous>, transform_indices = @transform_4, window_bounds = array<i64: 112, 128>}, {transform_indices = @transform_5, window_bounds = array<i64: 8, 128>}]} {
    %c0 = arith.constant 0 : index
    %c0_0 = arith.constant 0 : index
    %0 = vector.load %arg1[%c0, %c0_0] : memref<8x16xf32, #tpu.memory_space<vmem>>, vector<8x16xf32>
    %c0_1 = arith.constant 0 : index
    %c0_2 = arith.constant 0 : index
    %1 = vector.load %arg2[%c0_1, %c0_2] : memref<16x128xf32, #tpu.memory_space<vmem>>, vector<16x128xf32>
    %cst = arith.constant dense<0.000000e+00> : vector<8x128xf32>
    %2 = tpu.matmul %0, %1, %cst {dimension_numbers = #tpu.dot_dimension_numbers<[1], [0], [0], [1], [0, 0, 1, 1], [], []>, precision = #tpu.contract_precision<fp32>} : vector<8x16xf32>, vector<16x128xf32>, vector<8x128xf32> -> vector<8x128xf32>
    %c0_3 = arith.constant 0 : index
    %c0_4 = arith.constant 0 : index
    %3 = vector.load %arg3[%c0_3, %c0_4] : memref<16x112xf32, #tpu.memory_space<vmem>>, vector<16x112xf32>
    %cst_5 = arith.constant dense<0.000000e+00> : vector<8x112xf32>
    %4 = tpu.matmul %0, %3, %cst_5 {dimension_numbers = #tpu.dot_dimension_numbers<[1], [0], [0], [1], [0, 0, 1, 1], [], []>, precision = #tpu.contract_precision<fp32>} : vector<8x16xf32>, vector<16x112xf32>, vector<8x112xf32> -> vector<8x112xf32>
    %5 = arith.fptosi %4 : vector<8x112xf32> to vector<8x112xi32>
    %c0_6 = arith.constant 0 : index
    %c0_7 = arith.constant 0 : index
    %6 = vector.load %arg4[%c0_6, %c0_7] : memref<1x112xi32, #tpu.memory_space<vmem>>, vector<1x112xi32>
    %7 = vector.broadcast %6 : vector<1x112xi32> to vector<8x112xi32>
    %8 = arith.cmpi eq, %5, %7 : vector<8x112xi32>
    %9 = arith.extui %8 : vector<8x112xi1> to vector<8x112xi32>
    %10 = arith.sitofp %9 : vector<8x112xi32> to vector<8x112xf32>
    %c0_8 = arith.constant 0 : index
    %c0_9 = arith.constant 0 : index
    %11 = vector.load %arg5[%c0_8, %c0_9] : memref<112x128xf32, #tpu.memory_space<vmem>>, vector<112x128xf32>
    %cst_10 = arith.constant dense<0.000000e+00> : vector<8x128xf32>
    %12 = tpu.matmul %10, %11, %cst_10 {dimension_numbers = #tpu.dot_dimension_numbers<[1], [0], [0], [1], [0, 0, 1, 1], [], []>, precision = #tpu.contract_precision<fp32>} : vector<8x112xf32>, vector<112x128xf32>, vector<8x128xf32> -> vector<8x128xf32>
    %13 = arith.addf %2, %12 : vector<8x128xf32>
    %c0_11 = arith.constant 0 : index
    %c0_12 = arith.constant 0 : index
    %14 = vector.load %arg6[%c0_11, %c0_12] : memref<8x128xf32, #tpu.memory_space<vmem>>, vector<8x128xf32>
    tpu.vector_store %arg6[%c0_11, %c0_12], %13 {strides = array<i32>} : memref<8x128xf32, #tpu.memory_space<vmem>>, vector<8x128xf32>,
    return
  }
  func.func @transform_0(%arg0: i32) -> (i32, i32) {
    %c0_i32 = arith.constant 0 : i32
    %c0_i32_0 = arith.constant 0 : i32
    return %arg0, %c0_i32 : i32, i32
  }
  func.func @transform_1(%arg0: i32) -> (i32, i32) {
    %c0_i32 = arith.constant 0 : i32
    %c0_i32_0 = arith.constant 0 : i32
    %c0_i32_1 = arith.constant 0 : i32
    return %c0_i32, %c0_i32_0 : i32, i32
  }
  func.func @transform_2(%arg0: i32) -> (i32, i32) {
    %c0_i32 = arith.constant 0 : i32
    %c0_i32_0 = arith.constant 0 : i32
    %c0_i32_1 = arith.constant 0 : i32
    return %c0_i32, %c0_i32_0 : i32, i32
  }
  func.func @transform_3(%arg0: i32) -> (i32, i32) {
    %c0_i32 = arith.constant 0 : i32
    %c0_i32_0 = arith.constant 0 : i32
    %c0_i32_1 = arith.constant 0 : i32
    return %c0_i32, %c0_i32_0 : i32, i32
  }
  func.func @transform_4(%arg0: i32) -> (i32, i32) {
    %c0_i32 = arith.constant 0 : i32
    %c0_i32_0 = arith.constant 0 : i32
    %c0_i32_1 = arith.constant 0 : i32
    return %c0_i32, %c0_i32_0 : i32, i32
  }
  func.func @transform_5(%arg0: i32) -> (i32, i32) {
    %c0_i32 = arith.constant 0 : i32
    %c0_i32_0 = arith.constant 0 : i32
    return %arg0, %c0_i32 : i32, i32
  }
}

</mosaic_0001>

<llo_original>
// kernel: tpu_custom_call.1
$region0: #{tpu_custom_call.1}
  #allocation0 [shape = 'u32[]', space=smem, size = 0x4, offset = 0x4, fixed_abs, tag = 'smem constant byte address 0x4 - core index']
  #allocation1 [shape = 'u32[72,128]{1,0:T(1,128)}', space=vmem, size = 0x9000, scoped, tag = 'internal scratch']
  %s0 = inlined_call_operand.hbm [shape: f32[8,16], index: 0, kind: input, shape index: {}]
  %s1 = inlined_call_operand.hbm [shape: f32[16,128], index: 1, kind: input, shape index: {}]
  %s2 = inlined_call_operand.hbm [shape: f32[16,112], index: 2, kind: input, shape index: {}]
  %s3 = inlined_call_operand.vmem [shape: s32[1,112], index: 3, kind: input, shape index: {}]
  %s4 = inlined_call_operand.hbm [shape: f32[112,128], index: 4, kind: input, shape index: {}]
  %s5 = inlined_call_operand.hbm [shape: f32[8,128], index: 5, kind: output, shape index: {}]
  %s6 = sld [smem:[#allocation0]]
  $region46: #{tpu_custom_call.1} parent=0
    _
  %s8 = ssub.s32 1, %s6
  %s9 = scalar_select 0, %s8, %s6
  $region1: #{tpu_custom_call.1} parent=0
    #allocation2 [shape = 'u8[4096]{0}', space=vmem, size = 0x1000, scoped, tag = 'input window, operand 0, single buffered']
    #allocation3 [shape = 's32[1]{0}', space=sflag, size = 0x4, scoped, tag = 'scoped memory for tpu_custom_call.1']
    #allocation4 [shape = 's32[1]{0}', space=sflag, size = 0x4, scoped, tag = 'scoped memory for tpu_custom_call.1']
    #allocation5 [shape = 'u8[8192]{0}', space=vmem, size = 0x2000, scoped, tag = 'input window, operand 1, single buffered']
    #allocation6 [shape = 's32[1]{0}', space=sflag, size = 0x4, scoped, tag = 'scoped memory for tpu_custom_call.1']
    #allocation7 [shape = 'u8[8192]{0}', space=vmem, size = 0x2000, scoped, tag = 'input window, operand 2, single buffered']
    #allocation8 [shape = 'u8[57344]{0}', space=vmem, size = 0xe000, scoped, tag = 'input window, operand 4, single buffered']
    #allocation9 [shape = 's32[1]{0}', space=sflag, size = 0x4, scoped, tag = 'scoped memory for tpu_custom_call.1']
    #allocation10 [shape = 'u8[4096]{0}', space=vmem, size = 0x1000, scoped, tag = 'output window, operand 0, single buffered']
    %10 = vsyncpa [#allocation3], 0
    %11 = vsyncpa [#allocation6], 0
    %12 = vsyncpa [#allocation9], 0
    %13 = vsyncpa [#allocation4], 0
    // Predicated region
    $region2: #{tpu_custom_call.1} parent=1 // pred_check
      _
    $region3: #{tpu_custom_call.1} parent=1 // pred_check_branch
      %15 = sbr.rel (0) target = $region5
    $region4: #{tpu_custom_call.1} parent=1 // pred_region
      %17 = vsyncadd [#allocation3], 0
      %s19 = sshll.u32 %s0, 4
      %s20 = int_to_ptr.hbm [resolvable:$true] %s19
      %s21 = sshll.u32 [#allocation2], 4
      %s22 = int_to_ptr.vmem [resolvable:$true] %s21
      %24 = dma.hbm_to_vmem [thread:$0]  %s20, 128, %s22, [#allocation3]
    $region5: #{tpu_custom_call.1} parent=1 // pred_fallthru
      _
    // Predicated region
    $region6: #{tpu_custom_call.1} parent=1 // pred_check
      _
    $region7: #{tpu_custom_call.1} parent=1 // pred_check_branch
      %26 = sbr.rel (0) target = $region9
    $region8: #{tpu_custom_call.1} parent=1 // pred_region
      %28 = vsyncadd [#allocation6], 0
      %s29 = sshll.u32 %s1, 4
      %s30 = int_to_ptr.hbm [resolvable:$true] %s29
      %s31 = sshll.u32 [#allocation5], 4
      %s32 = int_to_ptr.vmem [resolvable:$true] %s31
      %37 = dma.hbm_to_vmem [thread:$0]  %s30, 256, %s32, [#allocation6], 128, 128, 8
    $region9: #{tpu_custom_call.1} parent=1 // pred_fallthru
      _
    // Predicated region
    $region10: #{tpu_custom_call.1} parent=1 // pred_check
      _
    $region11: #{tpu_custom_call.1} parent=1 // pred_check_branch
      %39 = sbr.rel (0) target = $region13
    $region12: #{tpu_custom_call.1} parent=1 // pred_region
      %41 = vsyncadd [#allocation6], 0
      %s42 = sshll.u32 %s2, 4
      %s43 = int_to_ptr.hbm [resolvable:$true] %s42
      %s44 = sshll.u32 [#allocation7], 4
      %s45 = int_to_ptr.vmem [resolvable:$true] %s44
      %50 = dma.hbm_to_vmem [thread:$0]  %s43, 256, %s45, [#allocation6], 128, 128, 8
    $region13: #{tpu_custom_call.1} parent=1 // pred_fallthru
      _
    // Predicated region
    $region14: #{tpu_custom_call.1} parent=1 // pred_check
      _
    $region15: #{tpu_custom_call.1} parent=1 // pred_check_branch
      %52 = sbr.rel (0) target = $region17
    $region16: #{tpu_custom_call.1} parent=1 // pred_region
      _
    $region17: #{tpu_custom_call.1} parent=1 // pred_fallthru
      _
    // Predicated region
    $region18: #{tpu_custom_call.1} parent=1 // pred_check
      _
    $region19: #{tpu_custom_call.1} parent=1 // pred_check_branch
      %54 = sbr.rel (0) target = $region21
    $region20: #{tpu_custom_call.1} parent=1 // pred_region
      %56 = vsyncadd [#allocation9], 0
      %s57 = sshll.u32 %s4, 4
      %s58 = int_to_ptr.hbm [resolvable:$true] %s57
      %s59 = sshll.u32 [#allocation8], 4
      %s60 = int_to_ptr.vmem [resolvable:$true] %s59
      %65 = dma.hbm_to_vmem [thread:$0]  %s58, 1792, %s60, [#allocation9], 128, 128, 8
    $region21: #{tpu_custom_call.1} parent=1 // pred_fallthru
      _
    // Predicated region
    $region22: #{tpu_custom_call.1} parent=1 // pred_check
      _
    $region23: #{tpu_custom_call.1} parent=1 // pred_check_branch
      %67 = sbr.rel (0) target = $region25
    $region24: #{tpu_custom_call.1} parent=1 // pred_region
      %69 = dma.done [#allocation3], 128
    $region25: #{tpu_custom_call.1} parent=1 // pred_fallthru
      _
    // Predicated region
    $region26: #{tpu_custom_call.1} parent=1 // pred_check
      _
    $region27: #{tpu_custom_call.1} parent=1 // pred_check_branch
      %71 = sbr.rel (0) target = $region29
    $region28: #{tpu_custom_call.1} parent=1 // pred_region
      %73 = dma.done [#allocation6], 256
    $region29: #{tpu_custom_call.1} parent=1 // pred_fallthru
      _
    // Predicated region
    $region30: #{tpu_custom_call.1} parent=1 // pred_check
      _
    $region31: #{tpu_custom_call.1} parent=1 // pred_check_branch
      %75 = sbr.rel (0) target = $region33
    $region32: #{tpu_custom_call.1} parent=1 // pred_region
      %77 = dma.done [#allocation6], 256
    $region33: #{tpu_custom_call.1} parent=1 // pred_fallthru
      _
    // Predicated region
    $region34: #{tpu_custom_call.1} parent=1 // pred_check
      _
    $region35: #{tpu_custom_call.1} parent=1 // pred_check_branch
      %79 = sbr.rel (0) target = $region37
    $region36: #{tpu_custom_call.1} parent=1 // pred_region
      %81 = dma.done [#allocation9], 1792
    $region37: #{tpu_custom_call.1} parent=1 // pred_fallthru
      _
    %v82 = vld [vmem:[#allocation2] sm:$0xff]
    %v83 = vld [vmem:[#allocation5] sm:$0xff]
    %v84 = vld [vmem:[#allocation5 + $0x8] sm:$0xff]
    %v85 = vld [vmem:[#allocation7] sm:$0xff]
    %v86 = vld [vmem:[#allocation7 + $0x8] sm:$0xff]
    %vm87 = vcmask 130048
    %v89 = vsel %vm87, %v82, 0
    %91 = vmatpush.msra.mxu0 0.0
    %92 = vmatpush.msra.mxu0 0.0
    %93 = vmatpush.msra.mxu0 0.0
    %94 = vmatpush.msra.mxu0 0.0
    %95 = vmatpush.msra.mxu0 0.0
    %96 = vmatpush.msra.mxu0 0.0
    %97 = vmatpush.msra.mxu0 0.0
    %98 = vmatpush.msra.mxu0 0.0
    %99 = vmatpush.msra.mxu0 0.0
    %100 = vmatpush.msra.mxu0 0.0
    %101 = vmatpush.msra.mxu0 0.0
    %102 = vmatpush.msra.mxu0 0.0
    %103 = vmatpush.msra.mxu0 0.0
    %104 = vmatpush.msra.mxu0 0.0
    %v105 = vand.u32 %v86, 4294901760
    %106 = vmatpush.msra.mxu0 %v105
    %v107 = vand.u32 %v85, 4294901760
    %108 = vmatpush.msra.mxu0 %v107
    %v109 = vand.u32 %v89, 4294901760
    %v110 = vsub.f32 %v89, %v109
    %v111 = vand.u32 %v110, 4294901760
    %v112 = vsub.f32 %v110, %v111
    %v113 = vand.u32 %v112, 4294901760
    %114 = vmatmul.f32.gmra.mxu0 %v113
    %v115 = vpop.f32.mrf.mxu0
    %v116 = vadd.f32 0.0, %v115
    %117 = vdwg.mxu0
    %118 = vmatpush.msra.mxu0 0.0
    %119 = vmatpush.msra.mxu0 0.0
    %120 = vmatpush.msra.mxu0 0.0
    %121 = vmatpush.msra.mxu0 0.0
    %122 = vmatpush.msra.mxu0 0.0
    %123 = vmatpush.msra.mxu0 0.0
    %124 = vmatpush.msra.mxu0 0.0
    %125 = vmatpush.msra.mxu0 0.0
    %126 = vmatpush.msra.mxu0 0.0
    %127 = vmatpush.msra.mxu0 0.0
    %128 = vmatpush.msra.mxu0 0.0
    %129 = vmatpush.msra.mxu0 0.0
    %130 = vmatpush.msra.mxu0 0.0
    %131 = vmatpush.msra.mxu0 0.0
    %v132 = vand.u32 %v86, 4294901760
    %v133 = vsub.f32 %v86, %v132
    %v134 = vand.u32 %v133, 4294901760
    %v135 = vsub.f32 %v133, %v134
    %v136 = vand.u32 %v135, 4294901760
    %137 = vmatpush.msra.mxu0 %v136
    %v138 = vand.u32 %v85, 4294901760
    %v139 = vsub.f32 %v85, %v138
    %v140 = vand.u32 %v139, 4294901760
    %v141 = vsub.f32 %v139, %v140
    %v142 = vand.u32 %v141, 4294901760
    %143 = vmatpush.msra.mxu0 %v142
    %v144 = vand.u32 %v89, 4294901760
    %145 = vmatmul.f32.gmra.mxu0 %v144
    %v146 = vpop.f32.mrf.mxu0
    %v147 = vadd.f32 %v116, %v146
    %148 = vdwg.mxu0
    %149 = vmatpush.msra.mxu0 0.0
    %150 = vmatpush.msra.mxu0 0.0
    %151 = vmatpush.msra.mxu0 0.0
    %152 = vmatpush.msra.mxu0 0.0
    %153 = vmatpush.msra.mxu0 0.0
    %154 = vmatpush.msra.mxu0 0.0
    %155 = vmatpush.msra.mxu0 0.0
    %156 = vmatpush.msra.mxu0 0.0
    %157 = vmatpush.msra.mxu0 0.0
    %158 = vmatpush.msra.mxu0 0.0
    %159 = vmatpush.msra.mxu0 0.0
    %160 = vmatpush.msra.mxu0 0.0
    %161 = vmatpush.msra.mxu0 0.0
    %162 = vmatpush.msra.mxu0 0.0
    %v163 = vand.u32 %v86, 4294901760
    %v164 = vsub.f32 %v86, %v163
    %165 = vmatpush.msra.mxu0 %v164
    %v166 = vand.u32 %v85, 4294901760
    %v167 = vsub.f32 %v85, %v166
    %168 = vmatpush.msra.mxu0 %v167
    %v169 = vand.u32 %v89, 4294901760
    %v170 = vsub.f32 %v89, %v169
    %171 = vmatmul.f32.gmra.mxu0 %v170
    %v172 = vpop.f32.mrf.mxu0
    %v173 = vadd.f32 %v147, %v172
    %174 = vdwg.mxu0
    %175 = vmatpush.msra.mxu0 0.0
    %176 = vmatpush.msra.mxu0 0.0
    %177 = vmatpush.msra.mxu0 0.0
    %178 = vmatpush.msra.mxu0 0.0
    %179 = vmatpush.msra.mxu0 0.0
    %180 = vmatpush.msra.mxu0 0.0
    %181 = vmatpush.msra.mxu0 0.0
    %182 = vmatpush.msra.mxu0 0.0
    %183 = vmatpush.msra.mxu0 0.0
    %184 = vmatpush.msra.mxu0 0.0
    %185 = vmatpush.msra.mxu0 0.0
    %186 = vmatpush.msra.mxu0 0.0
    %187 = vmatpush.msra.mxu0 0.0
    %188 = vmatpush.msra.mxu0 0.0
    %v189 = vand.u32 %v86, 4294901760
    %190 = vmatpush.msra.mxu0 %v189
    %v191 = vand.u32 %v85, 4294901760
    %192 = vmatpush.msra.mxu0 %v191
    %v193 = vand.u32 %v89, 4294901760
    %v194 = vsub.f32 %v89, %v193
    %v195 = vand.u32 %v194, 4294901760
    %196 = vmatmul.f32.gmra.mxu0 %v195
    %v197 = vpop.f32.mrf.mxu0
    %v198 = vadd.f32 %v173, %v197
    %199 = vdwg.mxu0
    %200 = vmatpush.msra.mxu0 0.0
    %201 = vmatpush.msra.mxu0 0.0
    %202 = vmatpush.msra.mxu0 0.0
    %203 = vmatpush.msra.mxu0 0.0
    %204 = vmatpush.msra.mxu0 0.0
    %205 = vmatpush.msra.mxu0 0.0
    %206 = vmatpush.msra.mxu0 0.0
    %207 = vmatpush.msra.mxu0 0.0
    %208 = vmatpush.msra.mxu0 0.0
    %209 = vmatpush.msra.mxu0 0.0
    %210 = vmatpush.msra.mxu0 0.0
    %211 = vmatpush.msra.mxu0 0.0
    %212 = vmatpush.msra.mxu0 0.0
    %213 = vmatpush.msra.mxu0 0.0
    %v214 = vand.u32 %v86, 4294901760
    %v215 = vsub.f32 %v86, %v214
    %v216 = vand.u32 %v215, 4294901760
    %217 = vmatpush.msra.mxu0 %v216
    %v218 = vand.u32 %v85, 4294901760
    %v219 = vsub.f32 %v85, %v218
    %v220 = vand.u32 %v219, 4294901760
    %221 = vmatpush.msra.mxu0 %v220
    %v222 = vand.u32 %v89, 4294901760
    %223 = vmatmul.f32.gmra.mxu0 %v222
    %v224 = vpop.f32.mrf.mxu0
    %v225 = vadd.f32 %v198, %v224
    %226 = vdwg.mxu0
    %227 = vmatpush.msra.mxu0 0.0
    %228 = vmatpush.msra.mxu0 0.0
    %229 = vmatpush.msra.mxu0 0.0
    %230 = vmatpush.msra.mxu0 0.0
    %231 = vmatpush.msra.mxu0 0.0
    %232 = vmatpush.msra.mxu0 0.0
    %233 = vmatpush.msra.mxu0 0.0
    %234 = vmatpush.msra.mxu0 0.0
    %235 = vmatpush.msra.mxu0 0.0
    %236 = vmatpush.msra.mxu0 0.0
    %237 = vmatpush.msra.mxu0 0.0
    %238 = vmatpush.msra.mxu0 0.0
    %239 = vmatpush.msra.mxu0 0.0
    %240 = vmatpush.msra.mxu0 0.0
    %v241 = vand.u32 %v86, 4294901760
    %242 = vmatpush.msra.mxu0 %v241
    %v243 = vand.u32 %v85, 4294901760
    %244 = vmatpush.msra.mxu0 %v243
    %v245 = vand.u32 %v89, 4294901760
    %246 = vmatmul.f32.gmra.mxu0 %v245
    %v247 = vpop.f32.mrf.mxu0
    %v248 = vadd.f32 %v225, %v247
    %249 = vdwg.mxu0
    %v250 = vcvt.f32.s32.to.zero.pseudo %v248
    %v251 = vld [vmem:[%s3] sm:$0x1]
    %v252 = vperm.slane %v251, 0
    %vm253 = vcmp.eq.s32.totalorder %v250, %v252
    %v254 = vsel %vm253, 1, 0
    %v255 = vcvt.s32.f32 %v254
    %v256 = vld [vmem:[#allocation8] sm:$0xff]
    %v257 = vld [vmem:[#allocation8 + $0x8] sm:$0xff]
    %v258 = vld [vmem:[#allocation8 + $0x10] sm:$0xff]
    %v259 = vld [vmem:[#allocation8 + $0x18] sm:$0xff]
    %v260 = vld [vmem:[#allocation8 + $0x20] sm:$0xff]
    %v261 = vld [vmem:[#allocation8 + $0x28] sm:$0xff]
    %v262 = vld [vmem:[#allocation8 + $0x30] sm:$0xff]
    %v263 = vld [vmem:[#allocation8 + $0x38] sm:$0xff]
    %v264 = vld [vmem:[#allocation8 + $0x40] sm:$0xff]
    %v265 = vld [vmem:[#allocation8 + $0x48] sm:$0xff]
    %v266 = vld [vmem:[#allocation8 + $0x50] sm:$0xff]
    %v267 = vld [vmem:[#allocation8 + $0x58] sm:$0xff]
    %v268 = vld [vmem:[#allocation8 + $0x60] sm:$0xff]
    %v269 = vld [vmem:[#allocation8 + $0x68] sm:$0xff]
    %vm270 = vcmask 916480
    %v272 = vsel %vm270, %v255, 0
    %274 = vmatpush.msra.mxu0 0.0
    %275 = vmatpush.msra.mxu0 0.0
    %v276 = vand.u32 %v269, 4294901760
    %277 = vmatpush.msra.mxu0 %v276
    %v278 = vand.u32 %v268, 4294901760
    %279 = vmatpush.msra.mxu0 %v278
    %v280 = vand.u32 %v267, 4294901760
    %281 = vmatpush.msra.mxu0 %v280
    %v282 = vand.u32 %v266, 4294901760
    %283 = vmatpush.msra.mxu0 %v282
    %v284 = vand.u32 %v265, 4294901760
    %285 = vmatpush.msra.mxu0 %v284
    %v286 = vand.u32 %v264, 4294901760
    %287 = vmatpush.msra.mxu0 %v286
    %v288 = vand.u32 %v263, 4294901760
    %289 = vmatpush.msra.mxu0 %v288
    %v290 = vand.u32 %v262, 4294901760
    %291 = vmatpush.msra.mxu0 %v290
    %v292 = vand.u32 %v261, 4294901760
    %293 = vmatpush.msra.mxu0 %v292
    %v294 = vand.u32 %v260, 4294901760
    %295 = vmatpush.msra.mxu0 %v294
    %v296 = vand.u32 %v259, 4294901760
    %297 = vmatpush.msra.mxu0 %v296
    %v298 = vand.u32 %v258, 4294901760
    %299 = vmatpush.msra.mxu0 %v298
    %v300 = vand.u32 %v257, 4294901760
    %301 = vmatpush.msra.mxu0 %v300
    %v302 = vand.u32 %v256, 4294901760
    %303 = vmatpush.msra.mxu0 %v302
    %v304 = vand.u32 %v272, 4294901760
    %v305 = vsub.f32 %v272, %v304
    %v306 = vand.u32 %v305, 4294901760
    %v307 = vsub.f32 %v305, %v306
    %v308 = vand.u32 %v307, 4294901760
    %309 = vmatmul.f32.gmra.mxu0 %v308
    %v310 = vpop.f32.mrf.mxu0
    %v311 = vadd.f32 0.0, %v310
    %312 = vdwg.mxu0
    %313 = vmatpush.msra.mxu0 0.0
    %314 = vmatpush.msra.mxu0 0.0
    %v315 = vand.u32 %v269, 4294901760
    %v316 = vsub.f32 %v269, %v315
    %v317 = vand.u32 %v316, 4294901760
    %v318 = vsub.f32 %v316, %v317
    %v319 = vand.u32 %v318, 4294901760
    %320 = vmatpush.msra.mxu0 %v319
    %v321 = vand.u32 %v268, 4294901760
    %v322 = vsub.f32 %v268, %v321
    %v323 = vand.u32 %v322, 4294901760
    %v324 = vsub.f32 %v322, %v323
    %v325 = vand.u32 %v324, 4294901760
    %326 = vmatpush.msra.mxu0 %v325
    %v327 = vand.u32 %v267, 4294901760
    %v328 = vsub.f32 %v267, %v327
    %v329 = vand.u32 %v328, 4294901760
    %v330 = vsub.f32 %v328, %v329
    %v331 = vand.u32 %v330, 4294901760
    %332 = vmatpush.msra.mxu0 %v331
    %v333 = vand.u32 %v266, 4294901760
    %v334 = vsub.f32 %v266, %v333
    %v335 = vand.u32 %v334, 4294901760
    %v336 = vsub.f32 %v334, %v335
    %v337 = vand.u32 %v336, 4294901760
    %338 = vmatpush.msra.mxu0 %v337
    %v339 = vand.u32 %v265, 4294901760
    %v340 = vsub.f32 %v265, %v339
    %v341 = vand.u32 %v340, 4294901760
    %v342 = vsub.f32 %v340, %v341
    %v343 = vand.u32 %v342, 4294901760
    %344 = vmatpush.msra.mxu0 %v343
    %v345 = vand.u32 %v264, 4294901760
    %v346 = vsub.f32 %v264, %v345
    %v347 = vand.u32 %v346, 4294901760
    %v348 = vsub.f32 %v346, %v347
    %v349 = vand.u32 %v348, 4294901760
    %350 = vmatpush.msra.mxu0 %v349
    %v351 = vand.u32 %v263, 4294901760
    %v352 = vsub.f32 %v263, %v351
    %v353 = vand.u32 %v352, 4294901760
    %v354 = vsub.f32 %v352, %v353
    %v355 = vand.u32 %v354, 4294901760
    %356 = vmatpush.msra.mxu0 %v355
    %v357 = vand.u32 %v262, 4294901760
    %v358 = vsub.f32 %v262, %v357
    %v359 = vand.u32 %v358, 4294901760
    %v360 = vsub.f32 %v358, %v359
    %v361 = vand.u32 %v360, 4294901760
    %362 = vmatpush.msra.mxu0 %v361
    %v363 = vand.u32 %v261, 4294901760
    %v364 = vsub.f32 %v261, %v363
    %v365 = vand.u32 %v364, 4294901760
    %v366 = vsub.f32 %v364, %v365
    %v367 = vand.u32 %v366, 4294901760
    %368 = vmatpush.msra.mxu0 %v367
    %v369 = vand.u32 %v260, 4294901760
    %v370 = vsub.f32 %v260, %v369
    %v371 = vand.u32 %v370, 4294901760
    %v372 = vsub.f32 %v370, %v371
    %v373 = vand.u32 %v372, 4294901760
    %374 = vmatpush.msra.mxu0 %v373
    %v375 = vand.u32 %v259, 4294901760
    %v376 = vsub.f32 %v259, %v375
    %v377 = vand.u32 %v376, 4294901760
    %v378 = vsub.f32 %v376, %v377
    %v379 = vand.u32 %v378, 4294901760
    %380 = vmatpush.msra.mxu0 %v379
    %v381 = vand.u32 %v258, 4294901760
    %v382 = vsub.f32 %v258, %v381
    %v383 = vand.u32 %v382, 4294901760
    %v384 = vsub.f32 %v382, %v383
    %v385 = vand.u32 %v384, 4294901760
    %386 = vmatpush.msra.mxu0 %v385
    %v387 = vand.u32 %v257, 4294901760
    %v388 = vsub.f32 %v257, %v387
    %v389 = vand.u32 %v388, 4294901760
    %v390 = vsub.f32 %v388, %v389
    %v391 = vand.u32 %v390, 4294901760
    %392 = vmatpush.msra.mxu0 %v391
    %v393 = vand.u32 %v256, 4294901760
    %v394 = vsub.f32 %v256, %v393
    %v395 = vand.u32 %v394, 4294901760
    %v396 = vsub.f32 %v394, %v395
    %v397 = vand.u32 %v396, 4294901760
    %398 = vmatpush.msra.mxu0 %v397
    %v399 = vand.u32 %v272, 4294901760
    %400 = vmatmul.f32.gmra.mxu0 %v399
    %v401 = vpop.f32.mrf.mxu0
    %v402 = vadd.f32 %v311, %v401
    %403 = vdwg.mxu0
    %404 = vmatpush.msra.mxu0 0.0
    %405 = vmatpush.msra.mxu0 0.0
    %v406 = vand.u32 %v269, 4294901760
    %v407 = vsub.f32 %v269, %v406
    %408 = vmatpush.msra.mxu0 %v407
    %v409 = vand.u32 %v268, 4294901760
    %v410 = vsub.f32 %v268, %v409
    %411 = vmatpush.msra.mxu0 %v410
    %v412 = vand.u32 %v267, 4294901760
    %v413 = vsub.f32 %v267, %v412
    %414 = vmatpush.msra.mxu0 %v413
    %v415 = vand.u32 %v266, 4294901760
    %v416 = vsub.f32 %v266, %v415
    %417 = vmatpush.msra.mxu0 %v416
    %v418 = vand.u32 %v265, 4294901760
    %v419 = vsub.f32 %v265, %v418
    %420 = vmatpush.msra.mxu0 %v419
    %v421 = vand.u32 %v264, 4294901760
    %v422 = vsub.f32 %v264, %v421
    %423 = vmatpush.msra.mxu0 %v422
    %v424 = vand.u32 %v263, 4294901760
    %v425 = vsub.f32 %v263, %v424
    %426 = vmatpush.msra.mxu0 %v425
    %v427 = vand.u32 %v262, 4294901760
    %v428 = vsub.f32 %v262, %v427
    %429 = vmatpush.msra.mxu0 %v428
    %v430 = vand.u32 %v261, 4294901760
    %v431 = vsub.f32 %v261, %v430
    %432 = vmatpush.msra.mxu0 %v431
    %v433 = vand.u32 %v260, 4294901760
    %v434 = vsub.f32 %v260, %v433
    %435 = vmatpush.msra.mxu0 %v434
    %v436 = vand.u32 %v259, 4294901760
    %v437 = vsub.f32 %v259, %v436
    %438 = vmatpush.msra.mxu0 %v437
    %v439 = vand.u32 %v258, 4294901760
    %v440 = vsub.f32 %v258, %v439
    %441 = vmatpush.msra.mxu0 %v440
    %v442 = vand.u32 %v257, 4294901760
    %v443 = vsub.f32 %v257, %v442
    %444 = vmatpush.msra.mxu0 %v443
    %v445 = vand.u32 %v256, 4294901760
    %v446 = vsub.f32 %v256, %v445
    %447 = vmatpush.msra.mxu0 %v446
    %v448 = vand.u32 %v272, 4294901760
    %v449 = vsub.f32 %v272, %v448
    %450 = vmatmul.f32.gmra.mxu0 %v449
    %v451 = vpop.f32.mrf.mxu0
    %v452 = vadd.f32 %v402, %v451
    %453 = vdwg.mxu0
    %454 = vmatpush.msra.mxu0 0.0
    %455 = vmatpush.msra.mxu0 0.0
    %v456 = vand.u32 %v269, 4294901760
    %457 = vmatpush.msra.mxu0 %v456
    %v458 = vand.u32 %v268, 4294901760
    %459 = vmatpush.msra.mxu0 %v458
    %v460 = vand.u32 %v267, 4294901760
    %461 = vmatpush.msra.mxu0 %v460
    %v462 = vand.u32 %v266, 4294901760
    %463 = vmatpush.msra.mxu0 %v462
    %v464 = vand.u32 %v265, 4294901760
    %465 = vmatpush.msra.mxu0 %v464
    %v466 = vand.u32 %v264, 4294901760
    %467 = vmatpush.msra.mxu0 %v466
    %v468 = vand.u32 %v263, 4294901760
    %469 = vmatpush.msra.mxu0 %v468
    %v470 = vand.u32 %v262, 4294901760
    %471 = vmatpush.msra.mxu0 %v470
    %v472 = vand.u32 %v261, 4294901760
    %473 = vmatpush.msra.mxu0 %v472
    %v474 = vand.u32 %v260, 4294901760
    %475 = vmatpush.msra.mxu0 %v474
    %v476 = vand.u32 %v259, 4294901760
    %477 = vmatpush.msra.mxu0 %v476
    %v478 = vand.u32 %v258, 4294901760
    %479 = vmatpush.msra.mxu0 %v478
    %v480 = vand.u32 %v257, 4294901760
    %481 = vmatpush.msra.mxu0 %v480
    %v482 = vand.u32 %v256, 4294901760
    %483 = vmatpush.msra.mxu0 %v482
    %v484 = vand.u32 %v272, 4294901760
    %v485 = vsub.f32 %v272, %v484
    %v486 = vand.u32 %v485, 4294901760
    %487 = vmatmul.f32.gmra.mxu0 %v486
    %v488 = vpop.f32.mrf.mxu0
    %v489 = vadd.f32 %v452, %v488
    %490 = vdwg.mxu0
    %491 = vmatpush.msra.mxu0 0.0
    %492 = vmatpush.msra.mxu0 0.0
    %v493 = vand.u32 %v269, 4294901760
    %v494 = vsub.f32 %v269, %v493
    %v495 = vand.u32 %v494, 4294901760
    %496 = vmatpush.msra.mxu0 %v495
    %v497 = vand.u32 %v268, 4294901760
    %v498 = vsub.f32 %v268, %v497
    %v499 = vand.u32 %v498, 4294901760
    %500 = vmatpush.msra.mxu0 %v499
    %v501 = vand.u32 %v267, 4294901760
    %v502 = vsub.f32 %v267, %v501
    %v503 = vand.u32 %v502, 4294901760
    %504 = vmatpush.msra.mxu0 %v503
    %v505 = vand.u32 %v266, 4294901760
    %v506 = vsub.f32 %v266, %v505
    %v507 = vand.u32 %v506, 4294901760
    %508 = vmatpush.msra.mxu0 %v507
    %v509 = vand.u32 %v265, 4294901760
    %v510 = vsub.f32 %v265, %v509
    %v511 = vand.u32 %v510, 4294901760
    %512 = vmatpush.msra.mxu0 %v511
    %v513 = vand.u32 %v264, 4294901760
    %v514 = vsub.f32 %v264, %v513
    %v515 = vand.u32 %v514, 4294901760
    %516 = vmatpush.msra.mxu0 %v515
    %v517 = vand.u32 %v263, 4294901760
    %v518 = vsub.f32 %v263, %v517
    %v519 = vand.u32 %v518, 4294901760
    %520 = vmatpush.msra.mxu0 %v519
    %v521 = vand.u32 %v262, 4294901760
    %v522 = vsub.f32 %v262, %v521
    %v523 = vand.u32 %v522, 4294901760
    %524 = vmatpush.msra.mxu0 %v523
    %v525 = vand.u32 %v261, 4294901760
    %v526 = vsub.f32 %v261, %v525
    %v527 = vand.u32 %v526, 4294901760
    %528 = vmatpush.msra.mxu0 %v527
    %v529 = vand.u32 %v260, 4294901760
    %v530 = vsub.f32 %v260, %v529
    %v531 = vand.u32 %v530, 4294901760
    %532 = vmatpush.msra.mxu0 %v531
    %v533 = vand.u32 %v259, 4294901760
    %v534 = vsub.f32 %v259, %v533
    %v535 = vand.u32 %v534, 4294901760
    %536 = vmatpush.msra.mxu0 %v535
    %v537 = vand.u32 %v258, 4294901760
    %v538 = vsub.f32 %v258, %v537
    %v539 = vand.u32 %v538, 4294901760
    %540 = vmatpush.msra.mxu0 %v539
    %v541 = vand.u32 %v257, 4294901760
    %v542 = vsub.f32 %v257, %v541
    %v543 = vand.u32 %v542, 4294901760
    %544 = vmatpush.msra.mxu0 %v543
    %v545 = vand.u32 %v256, 4294901760
    %v546 = vsub.f32 %v256, %v545
    %v547 = vand.u32 %v546, 4294901760
    %548 = vmatpush.msra.mxu0 %v547
    %v549 = vand.u32 %v272, 4294901760
    %550 = vmatmul.f32.gmra.mxu0 %v549
    %v551 = vpop.f32.mrf.mxu0
    %v552 = vadd.f32 %v489, %v551
    %553 = vdwg.mxu0
    %554 = vmatpush.msra.mxu0 0.0
    %555 = vmatpush.msra.mxu0 0.0
    %v556 = vand.u32 %v269, 4294901760
    %557 = vmatpush.msra.mxu0 %v556
    %v558 = vand.u32 %v268, 4294901760
    %559 = vmatpush.msra.mxu0 %v558
    %v560 = vand.u32 %v267, 4294901760
    %561 = vmatpush.msra.mxu0 %v560
    %v562 = vand.u32 %v266, 4294901760
    %563 = vmatpush.msra.mxu0 %v562
    %v564 = vand.u32 %v265, 4294901760
    %565 = vmatpush.msra.mxu0 %v564
    %v566 = vand.u32 %v264, 4294901760
    %567 = vmatpush.msra.mxu0 %v566
    %v568 = vand.u32 %v263, 4294901760
    %569 = vmatpush.msra.mxu0 %v568
    %v570 = vand.u32 %v262, 4294901760
    %571 = vmatpush.msra.mxu0 %v570
    %v572 = vand.u32 %v261, 4294901760
    %573 = vmatpush.msra.mxu0 %v572
    %v574 = vand.u32 %v260, 4294901760
    %575 = vmatpush.msra.mxu0 %v574
    %v576 = vand.u32 %v259, 4294901760
    %577 = vmatpush.msra.mxu0 %v576
    %v578 = vand.u32 %v258, 4294901760
    %579 = vmatpush.msra.mxu0 %v578
    %v580 = vand.u32 %v257, 4294901760
    %581 = vmatpush.msra.mxu0 %v580
    %v582 = vand.u32 %v256, 4294901760
    %583 = vmatpush.msra.mxu0 %v582
    %v584 = vand.u32 %v272, 4294901760
    %585 = vmatmul.f32.gmra.mxu0 %v584
    %v586 = vpop.f32.mrf.mxu0
    %v587 = vadd.f32 %v552, %v586
    %588 = vdwg.mxu0
    %589 = vmatpush.msra.mxu0 0.0
    %590 = vmatpush.msra.mxu0 0.0
    %591 = vmatpush.msra.mxu0 0.0
    %592 = vmatpush.msra.mxu0 0.0
    %593 = vmatpush.msra.mxu0 0.0
    %594 = vmatpush.msra.mxu0 0.0
    %595 = vmatpush.msra.mxu0 0.0
    %596 = vmatpush.msra.mxu0 0.0
    %597 = vmatpush.msra.mxu0 0.0
    %598 = vmatpush.msra.mxu0 0.0
    %599 = vmatpush.msra.mxu0 0.0
    %600 = vmatpush.msra.mxu0 0.0
    %601 = vmatpush.msra.mxu0 0.0
    %602 = vmatpush.msra.mxu0 0.0
    %v603 = vand.u32 %v84, 4294901760
    %604 = vmatpush.msra.mxu0 %v603
    %v605 = vand.u32 %v83, 4294901760
    %606 = vmatpush.msra.mxu0 %v605
    %v607 = vand.u32 %v89, 4294901760
    %v608 = vsub.f32 %v89, %v607
    %v609 = vand.u32 %v608, 4294901760
    %v610 = vsub.f32 %v608, %v609
    %v611 = vand.u32 %v610, 4294901760
    %612 = vmatmul.f32.gmra.mxu0 %v611
    %v613 = vpop.f32.mrf.mxu0
    %v614 = vadd.f32 %v587, %v613
    %615 = vdwg.mxu0
    %616 = vmatpush.msra.mxu0 0.0
    %617 = vmatpush.msra.mxu0 0.0
    %618 = vmatpush.msra.mxu0 0.0
    %619 = vmatpush.msra.mxu0 0.0
    %620 = vmatpush.msra.mxu0 0.0
    %621 = vmatpush.msra.mxu0 0.0
    %622 = vmatpush.msra.mxu0 0.0
    %623 = vmatpush.msra.mxu0 0.0
    %624 = vmatpush.msra.mxu0 0.0
    %625 = vmatpush.msra.mxu0 0.0
    %626 = vmatpush.msra.mxu0 0.0
    %627 = vmatpush.msra.mxu0 0.0
    %628 = vmatpush.msra.mxu0 0.0
    %629 = vmatpush.msra.mxu0 0.0
    %v630 = vand.u32 %v84, 4294901760
    %v631 = vsub.f32 %v84, %v630
    %v632 = vand.u32 %v631, 4294901760
    %v633 = vsub.f32 %v631, %v632
    %v634 = vand.u32 %v633, 4294901760
    %635 = vmatpush.msra.mxu0 %v634
    %v636 = vand.u32 %v83, 4294901760
    %v637 = vsub.f32 %v83, %v636
    %v638 = vand.u32 %v637, 4294901760
    %v639 = vsub.f32 %v637, %v638
    %v640 = vand.u32 %v639, 4294901760
    %641 = vmatpush.msra.mxu0 %v640
    %v642 = vand.u32 %v89, 4294901760
    %643 = vmatmul.f32.gmra.mxu0 %v642
    %v644 = vpop.f32.mrf.mxu0
    %v645 = vadd.f32 %v614, %v644
    %646 = vdwg.mxu0
    %647 = vmatpush.msra.mxu0 0.0
    %648 = vmatpush.msra.mxu0 0.0
    %649 = vmatpush.msra.mxu0 0.0
    %650 = vmatpush.msra.mxu0 0.0
    %651 = vmatpush.msra.mxu0 0.0
    %652 = vmatpush.msra.mxu0 0.0
    %653 = vmatpush.msra.mxu0 0.0
    %654 = vmatpush.msra.mxu0 0.0
    %655 = vmatpush.msra.mxu0 0.0
    %656 = vmatpush.msra.mxu0 0.0
    %657 = vmatpush.msra.mxu0 0.0
    %658 = vmatpush.msra.mxu0 0.0
    %659 = vmatpush.msra.mxu0 0.0
    %660 = vmatpush.msra.mxu0 0.0
    %v661 = vand.u32 %v84, 4294901760
    %v662 = vsub.f32 %v84, %v661
    %663 = vmatpush.msra.mxu0 %v662
    %v664 = vand.u32 %v83, 4294901760
    %v665 = vsub.f32 %v83, %v664
    %666 = vmatpush.msra.mxu0 %v665
    %v667 = vand.u32 %v89, 4294901760
    %v668 = vsub.f32 %v89, %v667
    %669 = vmatmul.f32.gmra.mxu0 %v668
    %v670 = vpop.f32.mrf.mxu0
    %v671 = vadd.f32 %v645, %v670
    %672 = vdwg.mxu0
    %673 = vmatpush.msra.mxu0 0.0
    %674 = vmatpush.msra.mxu0 0.0
    %675 = vmatpush.msra.mxu0 0.0
    %676 = vmatpush.msra.mxu0 0.0
    %677 = vmatpush.msra.mxu0 0.0
    %678 = vmatpush.msra.mxu0 0.0
    %679 = vmatpush.msra.mxu0 0.0
    %680 = vmatpush.msra.mxu0 0.0
    %681 = vmatpush.msra.mxu0 0.0
    %682 = vmatpush.msra.mxu0 0.0
    %683 = vmatpush.msra.mxu0 0.0
    %684 = vmatpush.msra.mxu0 0.0
    %685 = vmatpush.msra.mxu0 0.0
    %686 = vmatpush.msra.mxu0 0.0
    %v687 = vand.u32 %v84, 4294901760
    %688 = vmatpush.msra.mxu0 %v687
    %v689 = vand.u32 %v83, 4294901760
    %690 = vmatpush.msra.mxu0 %v689
    %v691 = vand.u32 %v89, 4294901760
    %v692 = vsub.f32 %v89, %v691
    %v693 = vand.u32 %v692, 4294901760
    %694 = vmatmul.f32.gmra.mxu0 %v693
    %v695 = vpop.f32.mrf.mxu0
    %v696 = vadd.f32 %v671, %v695
    %697 = vdwg.mxu0
    %698 = vmatpush.msra.mxu0 0.0
    %699 = vmatpush.msra.mxu0 0.0
    %700 = vmatpush.msra.mxu0 0.0
    %701 = vmatpush.msra.mxu0 0.0
    %702 = vmatpush.msra.mxu0 0.0
    %703 = vmatpush.msra.mxu0 0.0
    %704 = vmatpush.msra.mxu0 0.0
    %705 = vmatpush.msra.mxu0 0.0
    %706 = vmatpush.msra.mxu0 0.0
    %707 = vmatpush.msra.mxu0 0.0
    %708 = vmatpush.msra.mxu0 0.0
    %709 = vmatpush.msra.mxu0 0.0
    %710 = vmatpush.msra.mxu0 0.0
    %711 = vmatpush.msra.mxu0 0.0
    %v712 = vand.u32 %v84, 4294901760
    %v713 = vsub.f32 %v84, %v712
    %v714 = vand.u32 %v713, 4294901760
    %715 = vmatpush.msra.mxu0 %v714
    %v716 = vand.u32 %v83, 4294901760
    %v717 = vsub.f32 %v83, %v716
    %v718 = vand.u32 %v717, 4294901760
    %719 = vmatpush.msra.mxu0 %v718
    %v720 = vand.u32 %v89, 4294901760
    %721 = vmatmul.f32.gmra.mxu0 %v720
    %v722 = vpop.f32.mrf.mxu0
    %v723 = vadd.f32 %v696, %v722
    %724 = vdwg.mxu0
    %725 = vmatpush.msra.mxu0 0.0
    %726 = vmatpush.msra.mxu0 0.0
    %727 = vmatpush.msra.mxu0 0.0
    %728 = vmatpush.msra.mxu0 0.0
    %729 = vmatpush.msra.mxu0 0.0
    %730 = vmatpush.msra.mxu0 0.0
    %731 = vmatpush.msra.mxu0 0.0
    %732 = vmatpush.msra.mxu0 0.0
    %733 = vmatpush.msra.mxu0 0.0
    %734 = vmatpush.msra.mxu0 0.0
    %735 = vmatpush.msra.mxu0 0.0
    %736 = vmatpush.msra.mxu0 0.0
    %737 = vmatpush.msra.mxu0 0.0
    %738 = vmatpush.msra.mxu0 0.0
    %v739 = vand.u32 %v84, 4294901760
    %740 = vmatpush.msra.mxu0 %v739
    %v741 = vand.u32 %v83, 4294901760
    %742 = vmatpush.msra.mxu0 %v741
    %v743 = vand.u32 %v89, 4294901760
    %744 = vmatmul.f32.gmra.mxu0 %v743
    %v745 = vpop.f32.mrf.mxu0
    %v746 = vadd.f32 %v723, %v745
    %747 = vdwg.mxu0
    %748 = vst [vmem:[#allocation10] sm:$0xff] %v746
    // Predicated region
    $region38: #{tpu_custom_call.1} parent=1 // pred_check
      _
    $region39: #{tpu_custom_call.1} parent=1 // pred_check_branch
      %750 = sbr.rel (0) target = $region41
    $region40: #{tpu_custom_call.1} parent=1 // pred_region
      %752 = vsyncadd [#allocation4], 0
      %s754 = sshll.u32 [#allocation10], 4
      %s755 = int_to_ptr.vmem [resolvable:$true] %s754
      %s756 = sshll.u32 %s5, 4
      %s757 = int_to_ptr.hbm [resolvable:$true] %s756
      %759 = dma.vmem_to_hbm [thread:$0]  %s755, 128, %s757, [#allocation4]
    $region41: #{tpu_custom_call.1} parent=1 // pred_fallthru
      _
    // Predicated region
    $region42: #{tpu_custom_call.1} parent=1 // pred_check
      _
    $region43: #{tpu_custom_call.1} parent=1 // pred_check_branch
      %761 = sbr.rel (0) target = $region45
    $region44: #{tpu_custom_call.1} parent=1 // pred_region
      %763 = dma.done [#allocation4], 128
    $region45: #{tpu_custom_call.1} parent=1 // pred_fallthru
      _
    %764 = vsyncpa [#allocation3], 1
    %765 = vsyncpa [#allocation6], 1
    %766 = vsyncpa [#allocation9], 1
    %767 = vsyncpa [#allocation4], 1

</llo_original>
